<compile_context>
chip_gen: v7x
topology: tpu7x:2x2x1
jax: 0.10.0
libtpu: 0.0.40
codegen_flags: <defaults>
</compile_context>

<pallas_src>
import functools

import jax
import jax.numpy as jnp
from jax.experimental import pallas as pl
from jax.experimental.pallas import tpu as pltpu


def _round_up(x, m):
    return ((x + m - 1) // m) * m


# --------------------------------------------------------------------------
# Kernel body
# --------------------------------------------------------------------------
def _proj_ln_kernel(x_ref, w_ref, p_ref, o_ref, *, eps, use_ln, inv_dm):
    """One tile of tokens: y = x @ W + b ; optional LayerNorm over mask_dim.

    x_ref: (tile_m, D)   native dtype (bf16/f32) -> native-dtype MXU matmul
    w_ref: (D, Dm)       native dtype, resident across the grid
    p_ref: (8, Dm) f32   row 0 = bias, row 1 = gamma, row 2 = beta
    o_ref: (tile_m, Dm)

    LayerNorm uses the classic two-pass variance (subtract mean, then average
    the squared residuals) for parity with PyTorch's LayerNorm numerics.
    """
    bias = p_ref[0:1, :]                                     # (1, Dm) f32
    # Native-dtype operands, f32 accumulation on the MXU.
    y = jnp.dot(x_ref[...], w_ref[...],
                preferred_element_type=jnp.float32) + bias   # (tile_m, Dm) f32

    if use_ln:
        gamma = p_ref[1:2, :]
        beta = p_ref[2:3, :]
        mean = jnp.sum(y, axis=-1, keepdims=True) * inv_dm
        centered = y - mean
        var = jnp.sum(centered * centered, axis=-1, keepdims=True) * inv_dm
        y = centered * jax.lax.rsqrt(var + eps)
        y = y * gamma + beta

    o_ref[...] = y.astype(o_ref.dtype)


# --------------------------------------------------------------------------
# Generation-aware VMEM budgeting & tile sizing
# --------------------------------------------------------------------------
def _vmem_caps():
    """(vmem_limit_bytes for CompilerParams, tile-search budget)."""
    cap = 64 << 20                       # conservative fallback (v7x per-TC)
    try:
        cap = int(pltpu.get_tpu_info().vmem_capacity_bytes)
    except Exception:
        pass
    # ~75% of physical VMEM: ~96 MiB on 128 MiB parts (v5e/v6e), ~48 MiB on v7x.
    limit = max(min(cap * 3 // 4, cap - (8 << 20)), 16 << 20)
    limit = min(limit, cap)
    budget = max(limit - (4 << 20), limit // 2)   # headroom for Mosaic scratch
    return int(limit), int(budget)


def _pick_tile_m(M, D, Dm, in_bytes, out_bytes, budget):
    """Largest token tile (multiple of 8) whose working set fits `budget`.

    Per tile_m row:
      2*D*in_bytes   (double-buffered x tile)
      2*Dm*out_bytes (double-buffered output tile)
      4*Dm*4         (f32 LN intermediates: y, centered, normalized, scaled)
    Fixed:
      D*Dm*in_bytes  (weight, single-buffered)
      8*Dm*4         (packed bias/gamma/beta, single-buffered)
    """
    per_row = 2 * D * in_bytes + 2 * Dm * out_bytes + 4 * Dm * 4
    fixed = D * Dm * in_bytes + 8 * Dm * 4 + (2 << 20)        # +2 MiB misc slack
    tm_cap = max(budget - fixed, 8 * per_row) // per_row
    tm_cap = int(max(8, min((tm_cap // 8) * 8, 2048)))

    if M <= tm_cap:
        # Whole problem fits in one tile.  For big-enough M, still split into
        # 4 balanced steps so both v7x TensorCores get pipelined work.
        if M >= 4 * 512:
            return int(min(_round_up(pl.cdiv(M, 4), 8), tm_cap))
        return int(_round_up(M, 8))

    # Pick an even number of grid steps (balances v7x's 2 TCs) and the
    # matching tile size (any multiple of 8, not just a power of two).
    steps = pl.cdiv(M, tm_cap)
    if steps % 2:
        steps += 1
    tm = _round_up(pl.cdiv(M, steps), 8)
    return int(max(8, min(tm, tm_cap)))


# --------------------------------------------------------------------------
# Wrapper
# --------------------------------------------------------------------------
def mae_decoder_proj_neck_kernel(x, w, params_slab, *, use_ln=True, eps=1e-5,
                                 tile_m=None):
    """x: (B, N, embed_dim), w: (embed_dim, mask_dim), params_slab: (8, mask_dim) f32.
    Returns (B, N, mask_dim) in x.dtype."""
    B, N, D = x.shape
    Dm = w.shape[1]
    M = B * N

    in_dtype = x.dtype
    out_dtype = x.dtype
    in_bytes = jnp.dtype(in_dtype).itemsize
    out_bytes = jnp.dtype(out_dtype).itemsize

    vmem_limit, vmem_budget = _vmem_caps()
    if tile_m is None:
        tile_m = _pick_tile_m(M, D, Dm, in_bytes, out_bytes, vmem_budget)

    x2 = x.reshape(M, D)                       # free (contiguous) reshape
    w_p = w.astype(in_dtype)                   # native-dtype MXU operands
    params_slab = params_slab.astype(jnp.float32)

    kernel = functools.partial(_proj_ln_kernel, eps=float(eps), use_ln=use_ln,
                               inv_dm=1.0 / Dm)
    grid = (pl.cdiv(M, tile_m),)               # partial last block handled by
                                               # Pallas' clamped DMA; no jnp.pad

    def _call(single_buffer_resident):
        if single_buffer_resident:
            # Weight / params never change across grid steps -> 1 buffer.
            w_spec = pl.BlockSpec((D, Dm), lambda i: (0, 0),
                                  pipeline_mode=pl.Buffered(1))
            p_spec = pl.BlockSpec((8, Dm), lambda i: (0, 0),
                                  pipeline_mode=pl.Buffered(1))
        else:
            w_spec = pl.BlockSpec((D, Dm), lambda i: (0, 0))
            p_spec = pl.BlockSpec((8, Dm), lambda i: (0, 0))
        return pl.pallas_call(
            kernel,
            out_shape=jax.ShapeDtypeStruct((M, Dm), out_dtype),
            grid_spec=pltpu.PrefetchScalarGridSpec(
                num_scalar_prefetch=0,
                grid=grid,
                in_specs=[
                    pl.BlockSpec((tile_m, D), lambda i: (i, 0)),   # x tile
                    w_spec,                                        # weight
                    p_spec,                                        # b/gamma/beta
                ],
                out_specs=pl.BlockSpec((tile_m, Dm), lambda i: (i, 0)),
            ),
            compiler_params=pltpu.CompilerParams(
                dimension_semantics=("parallel",),
                vmem_limit_bytes=vmem_limit),
        )(x2, w_p, params_slab)

    try:
        out = _call(True)
    except Exception:
        # Older jax without BlockSpec(pipeline_mode=...) support: default 2-buf.
        out = _call(False)

    return out.reshape(B, N, Dm)


# --------------------------------------------------------------------------
# Parameter init / packing (done once, not per forward call)
# --------------------------------------------------------------------------
def pack_neck_params(b, gamma, beta):
    """Pack bias / LN gamma / LN beta into one sublane-aligned (8, Dm) f32 slab."""
    Dm = b.shape[0]
    slab = jnp.zeros((8, Dm), jnp.float32)
    slab = slab.at[0, :].set(b.astype(jnp.float32))
    slab = slab.at[1, :].set(gamma.astype(jnp.float32))
    slab = slab.at[2, :].set(beta.astype(jnp.float32))
    return slab


def init_params(key, embed_dim, mask_dim, type_embed_zero_init=True):
    """Matches the module's __init__/_init_weights; pre-packs per-call constants."""
    k_w, k_e = jax.random.split(key)
    # xavier_uniform_ on nn.Linear weight (mask_dim, embed_dim); store transposed.
    limit = (6.0 / (embed_dim + mask_dim)) ** 0.5
    w_lin = jax.random.uniform(k_w, (mask_dim, embed_dim), jnp.float32,
                               minval=-limit, maxval=limit)
    w = w_lin.T                                         # (embed_dim, mask_dim)
    b = jnp.zeros((mask_dim,), jnp.float32)             # constant_(bias, 0)
    gamma = jnp.ones((mask_dim,), jnp.float32)          # LayerNorm defaults
    beta = jnp.zeros((mask_dim,), jnp.float32)
    if type_embed_zero_init:
        task_embed = jnp.zeros((1, mask_dim), jnp.float32)
    else:
        task_embed = jax.random.normal(k_e, (1, mask_dim), jnp.float32)
    return {
        "w": w, "b": b, "gamma": gamma, "beta": beta,
        "params_slab": pack_neck_params(b, gamma, beta),
        "task_embed": task_embed,
    }


def mae_decoder_proj_neck_forward(features, params, *, modality="rgb",
                                  neck_layernorm=True):
    """Glue mirroring MAEdecoder_proj_neck.forward (dict in / dict out)."""
    x = features["backbone_output"]                      # (B, N, embed_dim)
    mask_features = mae_decoder_proj_neck_kernel(
        x, params["w"], params["params_slab"], use_ln=neck_layernorm)
    features = dict(features)
    features[f"neck_output_{modality}"] = {
        "mask_features": mask_features,
        "multi_scale_features": [x],                     # passthrough
        "task_embed_decoder": params["task_embed"],      # passthrough weight
    }
    return features


# --------------------------------------------------------------------------
# Self-test
# --------------------------------------------------------------------------
def _ln_ref(y, gamma, beta, eps=1e-5):
    mu = y.mean(-1, keepdims=True)
    var = ((y - mu) ** 2).mean(-1, keepdims=True)
    return (y - mu) / jnp.sqrt(var + eps) * gamma + beta


if __name__ == "__main__":
    key = jax.random.PRNGKey(0)
    k_x, k_p, k_r, k_m = jax.random.split(key, 4)

    B, N, embed_dim, mask_dim = 2, 64, 32, 16   # N = Hp*Wp = 8*8 tokens
    x = jax.random.normal(k_x, (B, N, embed_dim), jnp.float32)
    params = init_params(k_p, embed_dim, mask_dim, type_embed_zero_init=True)
    w, b = params["w"], params["b"]
    gamma, beta = params["gamma"], params["beta"]

    # 1) Full forward (dict in / dict out), f32.
    features = {"backbone_output": x}
    out = mae_decoder_proj_neck_forward(features, params, neck_layernorm=True)
    mask_feats = out["neck_output_rgb"]["mask_features"]
    jax.block_until_ready(mask_feats)
    ref = _ln_ref(x @ w + b, gamma, beta)
    assert mask_feats.shape == (B, N, mask_dim)
    assert jnp.allclose(mask_feats, ref, atol=1e-4, rtol=1e-4)

    # 2) Ragged, non-tile-aligned token count (partial-block path, grid=1).
    x_rag = jax.random.normal(k_r, (1, 37, embed_dim), jnp.float32)
    out_rag = mae_decoder_proj_neck_kernel(x_rag, w, params["params_slab"],
                                           use_ln=True)
    jax.block_until_ready(out_rag)
    ref_rag = _ln_ref(x_rag @ w + b, gamma, beta)
    assert out_rag.shape == (1, 37, mask_dim)
    assert jnp.allclose(out_rag, ref_rag, atol=1e-4, rtol=1e-4)

    # 3) Multi-step grid with a partial last block (forced small tile_m).
    x_mt = jax.random.normal(k_m, (2, 150, embed_dim), jnp.float32)  # M=300
    out_mt = mae_decoder_proj_neck_kernel(x_mt, w, params["params_slab"],
                                          use_ln=True, tile_m=64)
    jax.block_until_ready(out_mt)
    ref_mt = _ln_ref(x_mt @ w + b, gamma, beta)
    assert out_mt.shape == (2, 150, mask_dim)
    assert jnp.allclose(out_mt, ref_mt, atol=1e-4, rtol=1e-4)

    # 4) bf16 activations (native-dtype MXU path) — previously untested.
    x_bf = x.astype(jnp.bfloat16)
    out_bf = mae_decoder_proj_neck_kernel(x_bf, w, params["params_slab"],
                                          use_ln=True)
    jax.block_until_ready(out_bf)
    xq = x_bf.astype(jnp.float32)
    wq = w.astype(jnp.bfloat16).astype(jnp.float32)
    ref_bf = _ln_ref(xq @ wq + b, gamma, beta)
    assert out_bf.dtype == jnp.bfloat16
    assert jnp.allclose(out_bf.astype(jnp.float32), ref_bf, atol=5e-2, rtol=5e-2)

    print("KERNEL_OK")
</pallas_src>

<mosaic_0001>
module attributes {stable_mosaic.version = 11 : i64} {
  func.func @_proj_ln_kernel(%arg0: i32, %arg1: memref<128x32xf32, #tpu.memory_space<vmem>>, %arg2: memref<32x16xf32, #tpu.memory_space<vmem>>, %arg3: memref<8x16xf32, #tpu.memory_space<vmem>>, %arg4: memref<128x16xf32, #tpu.memory_space<vmem>>) attributes {dimension_semantics = [#tpu.dimension_semantics<parallel>], iteration_bounds = array<i64: 1>, scalar_prefetch = 0 : i64, scratch_operands = 0 : i64, tpu.core_type = #tpu.core_type<tc>, window_params = [{transform_indices = @transform_0, window_bounds = array<i64: 128, 32>}, {pipeline_mode = #tpu.pipeline_mode<synchronous>, transform_indices = @transform_1, window_bounds = array<i64: 32, 16>}, {pipeline_mode = #tpu.pipeline_mode<synchronous>, transform_indices = @transform_2, window_bounds = array<i64: 8, 16>}, {transform_indices = @transform_3, window_bounds = array<i64: 128, 16>}]} {
    %c0 = arith.constant 0 : index
    %c0_0 = arith.constant 0 : index
    %0 = vector.load %arg3[%c0, %c0_0] : memref<8x16xf32, #tpu.memory_space<vmem>>, vector<1x16xf32>
    %c0_1 = arith.constant 0 : index
    %c0_2 = arith.constant 0 : index
    %1 = vector.load %arg1[%c0_1, %c0_2] : memref<128x32xf32, #tpu.memory_space<vmem>>, vector<128x32xf32>
    %c0_3 = arith.constant 0 : index
    %c0_4 = arith.constant 0 : index
    %2 = vector.load %arg2[%c0_3, %c0_4] : memref<32x16xf32, #tpu.memory_space<vmem>>, vector<32x16xf32>
    %cst = arith.constant dense<0.000000e+00> : vector<128x16xf32>
    %3 = tpu.matmul %1, %2, %cst {dimension_numbers = #tpu.dot_dimension_numbers<[1], [0], [0], [1], [0, 0, 1, 1], [], []>} : vector<128x32xf32>, vector<32x16xf32>, vector<128x16xf32> -> vector<128x16xf32>
    %4 = vector.broadcast %0 : vector<1x16xf32> to vector<128x16xf32>
    %5 = arith.addf %3, %4 : vector<128x16xf32>
    %c1 = arith.constant 1 : index
    %c0_5 = arith.constant 0 : index
    %6 = vector.load %arg3[%c1, %c0_5] : memref<8x16xf32, #tpu.memory_space<vmem>>, vector<1x16xf32>
    %c2 = arith.constant 2 : index
    %c0_6 = arith.constant 0 : index
    %7 = vector.load %arg3[%c2, %c0_6] : memref<8x16xf32, #tpu.memory_space<vmem>>, vector<1x16xf32>
    %cst_7 = arith.constant dense<0.000000e+00> : vector<128xf32>
    %8 = vector.multi_reduction <add>, %5, %cst_7 [1] : vector<128x16xf32> to vector<128xf32>
    %9 = vector.shape_cast %8 : vector<128xf32> to vector<128x1xf32>
    %cst_8 = arith.constant 6.250000e-02 : f32
    %10 = vector.broadcast %cst_8 : f32 to vector<128x1xf32>
    %11 = arith.mulf %9, %10 : vector<128x1xf32>
    %12 = vector.broadcast %11 : vector<128x1xf32> to vector<128x16xf32>
    %13 = arith.subf %5, %12 : vector<128x16xf32>
    %14 = arith.mulf %13, %13 : vector<128x16xf32>
    %cst_9 = arith.constant dense<0.000000e+00> : vector<128xf32>
    %15 = vector.multi_reduction <add>, %14, %cst_9 [1] : vector<128x16xf32> to vector<128xf32>
    %16 = vector.shape_cast %15 : vector<128xf32> to vector<128x1xf32>
    %cst_10 = arith.constant 6.250000e-02 : f32
    %17 = vector.broadcast %cst_10 : f32 to vector<128x1xf32>
    %18 = arith.mulf %16, %17 : vector<128x1xf32>
    %cst_11 = arith.constant 9.99999974E-6 : f32
    %19 = vector.broadcast %cst_11 : f32 to vector<128x1xf32>
    %20 = arith.addf %18, %19 : vector<128x1xf32>
    %21 = math.rsqrt %20 : vector<128x1xf32>
    %22 = vector.broadcast %21 : vector<128x1xf32> to vector<128x16xf32>
    %23 = arith.mulf %13, %22 : vector<128x16xf32>
    %24 = vector.broadcast %6 : vector<1x16xf32> to vector<128x16xf32>
    %25 = arith.mulf %23, %24 : vector<128x16xf32>
    %26 = vector.broadcast %7 : vector<1x16xf32> to vector<128x16xf32>
    %27 = arith.addf %25, %26 : vector<128x16xf32>
    %c0_12 = arith.constant 0 : index
    %c0_13 = arith.constant 0 : index
    %28 = vector.load %arg4[%c0_12, %c0_13] : memref<128x16xf32, #tpu.memory_space<vmem>>, vector<128x16xf32>
    tpu.vector_store %arg4[%c0_12, %c0_13], %27 {strides = array<i32>} : memref<128x16xf32, #tpu.memory_space<vmem>>, vector<128x16xf32>,
    return
  }
  func.func @transform_0(%arg0: i32) -> (i32, i32) {
    %c0_i32 = arith.constant 0 : i32
    %c0_i32_0 = arith.constant 0 : i32
    return %arg0, %c0_i32 : i32, i32
  }
  func.func @transform_1(%arg0: i32) -> (i32, i32) {
    %c0_i32 = arith.constant 0 : i32
    %c0_i32_0 = arith.constant 0 : i32
    %c0_i32_1 = arith.constant 0 : i32
    return %c0_i32, %c0_i32_0 : i32, i32
  }
  func.func @transform_2(%arg0: i32) -> (i32, i32) {
    %c0_i32 = arith.constant 0 : i32
    %c0_i32_0 = arith.constant 0 : i32
    %c0_i32_1 = arith.constant 0 : i32
    return %c0_i32, %c0_i32_0 : i32, i32
  }
  func.func @transform_3(%arg0: i32) -> (i32, i32) {
    %c0_i32 = arith.constant 0 : i32
    %c0_i32_0 = arith.constant 0 : i32
    return %arg0, %c0_i32 : i32, i32
  }
}

module attributes {stable_mosaic.version = 11 : i64} {
  func.func @_proj_ln_kernel(%arg0: i32, %arg1: memref<128x32xf32, #tpu.memory_space<vmem>>, %arg2: memref<32x16xf32, #tpu.memory_space<vmem>>, %arg3: memref<8x16xf32, #tpu.memory_space<vmem>>, %arg4: memref<128x16xf32, #tpu.memory_space<vmem>>) attributes {dimension_semantics = [#tpu.dimension_semantics<parallel>], iteration_bounds = array<i64: 1>, scalar_prefetch = 0 : i64, scratch_operands = 0 : i64, tpu.core_type = #tpu.core_type<tc>, window_params = [{transform_indices = @transform_0, window_bounds = array<i64: 128, 32>}, {pipeline_mode = #tpu.pipeline_mode<synchronous>, transform_indices = @transform_1, window_bounds = array<i64: 32, 16>}, {pipeline_mode = #tpu.pipeline_mode<synchronous>, transform_indices = @transform_2, window_bounds = array<i64: 8, 16>}, {transform_indices = @transform_3, window_bounds = array<i64: 128, 16>}]} {
    %c0 = arith.constant 0 : index
    %c0_0 = arith.constant 0 : index
    %0 = vector.load %arg3[%c0, %c0_0] : memref<8x16xf32, #tpu.memory_space<vmem>>, vector<1x16xf32>
    %c0_1 = arith.constant 0 : index
    %c0_2 = arith.constant 0 : index
    %1 = vector.load %arg1[%c0_1, %c0_2] : memref<128x32xf32, #tpu.memory_space<vmem>>, vector<128x32xf32>
    %c0_3 = arith.constant 0 : index
    %c0_4 = arith.constant 0 : index
    %2 = vector.load %arg2[%c0_3, %c0_4] : memref<32x16xf32, #tpu.memory_space<vmem>>, vector<32x16xf32>
    %cst = arith.constant dense<0.000000e+00> : vector<128x16xf32>
    %3 = tpu.matmul %1, %2, %cst {dimension_numbers = #tpu.dot_dimension_numbers<[1], [0], [0], [1], [0, 0, 1, 1], [], []>} : vector<128x32xf32>, vector<32x16xf32>, vector<128x16xf32> -> vector<128x16xf32>
    %4 = vector.broadcast %0 : vector<1x16xf32> to vector<128x16xf32>
    %5 = arith.addf %3, %4 : vector<128x16xf32>
    %c1 = arith.constant 1 : index
    %c0_5 = arith.constant 0 : index
    %6 = vector.load %arg3[%c1, %c0_5] : memref<8x16xf32, #tpu.memory_space<vmem>>, vector<1x16xf32>
    %c2 = arith.constant 2 : index
    %c0_6 = arith.constant 0 : index
    %7 = vector.load %arg3[%c2, %c0_6] : memref<8x16xf32, #tpu.memory_space<vmem>>, vector<1x16xf32>
    %cst_7 = arith.constant dense<0.000000e+00> : vector<128xf32>
    %8 = vector.multi_reduction <add>, %5, %cst_7 [1] : vector<128x16xf32> to vector<128xf32>
    %9 = vector.shape_cast %8 : vector<128xf32> to vector<128x1xf32>
    %cst_8 = arith.constant 6.250000e-02 : f32
    %10 = vector.broadcast %cst_8 : f32 to vector<128x1xf32>
    %11 = arith.mulf %9, %10 : vector<128x1xf32>
    %12 = vector.broadcast %11 : vector<128x1xf32> to vector<128x16xf32>
    %13 = arith.subf %5, %12 : vector<128x16xf32>
    %14 = arith.mulf %13, %13 : vector<128x16xf32>
    %cst_9 = arith.constant dense<0.000000e+00> : vector<128xf32>
    %15 = vector.multi_reduction <add>, %14, %cst_9 [1] : vector<128x16xf32> to vector<128xf32>
    %16 = vector.shape_cast %15 : vector<128xf32> to vector<128x1xf32>
    %cst_10 = arith.constant 6.250000e-02 : f32
    %17 = vector.broadcast %cst_10 : f32 to vector<128x1xf32>
    %18 = arith.mulf %16, %17 : vector<128x1xf32>
    %cst_11 = arith.constant 9.99999974E-6 : f32
    %19 = vector.broadcast %cst_11 : f32 to vector<128x1xf32>
    %20 = arith.addf %18, %19 : vector<128x1xf32>
    %21 = math.rsqrt %20 : vector<128x1xf32>
    %22 = vector.broadcast %21 : vector<128x1xf32> to vector<128x16xf32>
    %23 = arith.mulf %13, %22 : vector<128x16xf32>
    %24 = vector.broadcast %6 : vector<1x16xf32> to vector<128x16xf32>
    %25 = arith.mulf %23, %24 : vector<128x16xf32>
    %26 = vector.broadcast %7 : vector<1x16xf32> to vector<128x16xf32>
    %27 = arith.addf %25, %26 : vector<128x16xf32>
    %c0_12 = arith.constant 0 : index
    %c0_13 = arith.constant 0 : index
    %28 = vector.load %arg4[%c0_12, %c0_13] : memref<128x16xf32, #tpu.memory_space<vmem>>, vector<128x16xf32>
    tpu.vector_store %arg4[%c0_12, %c0_13], %27 {strides = array<i32>} : memref<128x16xf32, #tpu.memory_space<vmem>>, vector<128x16xf32>,
    return
  }
  func.func @transform_0(%arg0: i32) -> (i32, i32) {
    %c0_i32 = arith.constant 0 : i32
    %c0_i32_0 = arith.constant 0 : i32
    return %arg0, %c0_i32 : i32, i32
  }
  func.func @transform_1(%arg0: i32) -> (i32, i32) {
    %c0_i32 = arith.constant 0 : i32
    %c0_i32_0 = arith.constant 0 : i32
    %c0_i32_1 = arith.constant 0 : i32
    return %c0_i32, %c0_i32_0 : i32, i32
  }
  func.func @transform_2(%arg0: i32) -> (i32, i32) {
    %c0_i32 = arith.constant 0 : i32
    %c0_i32_0 = arith.constant 0 : i32
    %c0_i32_1 = arith.constant 0 : i32
    return %c0_i32, %c0_i32_0 : i32, i32
  }
  func.func @transform_3(%arg0: i32) -> (i32, i32) {
    %c0_i32 = arith.constant 0 : i32
    %c0_i32_0 = arith.constant 0 : i32
    return %arg0, %c0_i32 : i32, i32
  }
}

</mosaic_0001>

<llo_original>
// kernel: tpu_custom_call.1
$region0: #{tpu_custom_call.1}
  #allocation0 [shape = 'u32[]', space=smem, size = 0x4, offset = 0x4, fixed_abs, tag = 'smem constant byte address 0x4 - core index']
  #allocation1 [shape = 'u32[144,128]{1,0:T(1,128)}', space=vmem, size = 0x12000, scoped, tag = 'internal scratch']
  %s0 = inlined_call_operand.vmem [shape: f32[128,32], index: 0, kind: input, shape index: {}]
  %s1 = inlined_call_operand.vmem [shape: f32[32,16], index: 1, kind: input, shape index: {}]
  %s2 = inlined_call_operand.vmem [shape: f32[8,16], index: 2, kind: input, shape index: {}]
  %s3 = inlined_call_operand.vmem [shape: f32[128,16], index: 3, kind: output, shape index: {}]
  %s4 = sld [smem:[#allocation0]]
  $region22: #{tpu_custom_call.1} parent=0
    _
  %s6 = ssub.s32 1, %s4
  %s7 = scalar_select 0, %s6, %s4
  // Predicated region
  $region2: #{tpu_custom_call.1} parent=0 // pred_check
    _
  $region3: #{tpu_custom_call.1} parent=0 // pred_check_branch
    %9 = sbr.rel (0) target = $region5
  $region4: #{tpu_custom_call.1} parent=0 // pred_region
    _
  $region5: #{tpu_custom_call.1} parent=0 // pred_fallthru
    _
  // Predicated region
  $region6: #{tpu_custom_call.1} parent=0 // pred_check
    _
  $region7: #{tpu_custom_call.1} parent=0 // pred_check_branch
    %11 = sbr.rel (0) target = $region9
  $region8: #{tpu_custom_call.1} parent=0 // pred_region
    _
  $region9: #{tpu_custom_call.1} parent=0 // pred_fallthru
    _
  // Predicated region
  $region10: #{tpu_custom_call.1} parent=0 // pred_check
    _
  $region11: #{tpu_custom_call.1} parent=0 // pred_check_branch
    %13 = sbr.rel (0) target = $region13
  $region12: #{tpu_custom_call.1} parent=0 // pred_region
    _
  $region13: #{tpu_custom_call.1} parent=0 // pred_fallthru
    _
  %v14 = vld [vmem:[%s2] sm:$0x1]
  %v15 = vld [vmem:[%s0] sm:$0xff]
  %v16 = vld [vmem:[%s0 + $0x8] sm:$0xff]
  %v17 = vld [vmem:[%s0 + $0x10] sm:$0xff]
  %v18 = vld [vmem:[%s0 + $0x18] sm:$0xff]
  %v19 = vld [vmem:[%s0 + $0x20] sm:$0xff]
  %v20 = vld [vmem:[%s0 + $0x28] sm:$0xff]
  %v21 = vld [vmem:[%s0 + $0x30] sm:$0xff]
  %v22 = vld [vmem:[%s0 + $0x38] sm:$0xff]
  %v23 = vld [vmem:[%s0 + $0x40] sm:$0xff]
  %v24 = vld [vmem:[%s0 + $0x48] sm:$0xff]
  %v25 = vld [vmem:[%s0 + $0x50] sm:$0xff]
  %v26 = vld [vmem:[%s0 + $0x58] sm:$0xff]
  %v27 = vld [vmem:[%s0 + $0x60] sm:$0xff]
  %v28 = vld [vmem:[%s0 + $0x68] sm:$0xff]
  %v29 = vld [vmem:[%s0 + $0x70] sm:$0xff]
  %v30 = vld [vmem:[%s0 + $0x78] sm:$0xff]
  %v31 = vld [vmem:[%s1] sm:$0xff]
  %v32 = vld [vmem:[%s1 + $0x8] sm:$0xff]
  %v33 = vld [vmem:[%s1 + $0x10] sm:$0xff]
  %v34 = vld [vmem:[%s1 + $0x18] sm:$0xff]
  %v35 = vlaneseq
  %v36 = vshrl.u32 %v35, 7
  %v37 = vsub.s32 0, %v36
  %v38 = vrot.slane %v14, %v37
  %vm39 = vcmask 261120
  %v41 = vsel %vm39, %v15, 0
  %v44 = vsel %vm39, %v16, 0
  %v47 = vsel %vm39, %v17, 0
  %v50 = vsel %vm39, %v18, 0
  %v53 = vsel %vm39, %v19, 0
  %v56 = vsel %vm39, %v20, 0
  %v59 = vsel %vm39, %v21, 0
  %v62 = vsel %vm39, %v22, 0
  %v65 = vsel %vm39, %v23, 0
  %v68 = vsel %vm39, %v24, 0
  %v71 = vsel %vm39, %v25, 0
  %v74 = vsel %vm39, %v26, 0
  %v77 = vsel %vm39, %v27, 0
  %v80 = vsel %vm39, %v28, 0
  %v83 = vsel %vm39, %v29, 0
  %v86 = vsel %vm39, %v30, 0
  %88 = vmatprep.subr.mxu0 0.0
  %89 = vmatpush1.msra.mxu0 %v31
  %90 = vmatprep.subr.mxu0 0.0
  %91 = vmatpush1.msra.mxu0 %v32
  %92 = vmatprep.subr.mxu0 0.0
  %93 = vmatpush1.msra.mxu0 %v33
  %94 = vmatprep.subr.mxu0 0.0
  %95 = vmatpush1.msra.mxu0 %v34
  %96 = vmatprep.subr.mxu0 0.0
  %97 = vmatpush1.msra.mxu0 0.0
  %98 = vmatprep.subr.mxu0 0.0
  %99 = vmatpush1.msra.mxu0 0.0
  %100 = vmatprep.subr.mxu0 0.0
  %101 = vmatpush1.msra.mxu0 0.0
  %102 = vmatprep.subr.mxu0 0.0
  %103 = vmatpush1.msra.mxu0 0.0
  %104 = vmatprep.subr.mxu0 0.0
  %105 = vmatpush1.msra.mxu0 0.0
  %106 = vmatprep.subr.mxu0 0.0
  %107 = vmatpush1.msra.mxu0 0.0
  %108 = vmatprep.subr.mxu0 0.0
  %109 = vmatpush1.msra.mxu0 0.0
  %110 = vmatprep.subr.mxu0 0.0
  %111 = vmatpush1.msra.mxu0 0.0
  %112 = vmatprep.subr.mxu0 0.0
  %113 = vmatpush1.msra.mxu0 0.0
  %114 = vmatprep.subr.mxu0 0.0
  %115 = vmatpush1.msra.mxu0 0.0
  %116 = vmatprep.subr.mxu0 0.0
  %117 = vmatpush1.msra.mxu0 0.0
  %118 = vmatprep.subr.mxu0 0.0
  %119 = vmatpush1.msra.mxu0 0.0
  %120 = vmatprep.subr.mxu0 0.0
  %121 = vmatpush1.msra.mxu0 0.0
  %122 = vmatprep.subr.mxu0 0.0
  %123 = vmatpush1.msra.mxu0 0.0
  %124 = vmatprep.subr.mxu0 0.0
  %125 = vmatpush1.msra.mxu0 0.0
  %126 = vmatprep.subr.mxu0 0.0
  %127 = vmatpush1.msra.mxu0 0.0
  %128 = vmatprep.subr.mxu0 0.0
  %129 = vmatpush1.msra.mxu0 0.0
  %130 = vmatprep.subr.mxu0 0.0
  %131 = vmatpush1.msra.mxu0 0.0
  %132 = vmatprep.subr.mxu0 0.0
  %133 = vmatpush1.msra.mxu0 0.0
  %134 = vmatprep.subr.mxu0 0.0
  %135 = vmatpush1.msra.mxu0 0.0
  %136 = vmatprep.subr.mxu0 0.0
  %137 = vmatpush1.msra.mxu0 0.0
  %138 = vmatprep.subr.mxu0 0.0
  %139 = vmatpush1.msra.mxu0 0.0
  %140 = vmatprep.subr.mxu0 0.0
  %141 = vmatpush1.msra.mxu0 0.0
  %142 = vmatprep.subr.mxu0 0.0
  %143 = vmatpush1.msra.mxu0 0.0
  %144 = vmatprep.subr.mxu0 0.0
  %145 = vmatpush1.msra.mxu0 0.0
  %146 = vmatprep.subr.mxu0 0.0
  %147 = vmatpush1.msra.mxu0 0.0
  %148 = vmatprep.subr.mxu0 0.0
  %149 = vmatpush1.msra.mxu0 0.0
  %150 = vmatprep.subr.mxu0 0.0
  %151 = vmatpush1.msra.mxu0 0.0
  %152 = vmatprep.mubr.f32.mxu0 0.0
  %153 = vmatmul.mubr.f32.gmra.mrb[0].mxu0 %v41
  %v154 = vpop.f32.mrb[0].mxu0
  %v155 = vadd.f32 %v38, %v154
  %v156 = vpop.f32.mrb[0].mxu0
  %157 = vmatprep.mubr.f32.mxu0 0.0
  %158 = vmatmul.mubr.f32.gmra.mrb[0].mxu0 %v44
  %v159 = vpop.f32.mrb[0].mxu0
  %v160 = vadd.f32 %v38, %v159
  %v161 = vpop.f32.mrb[0].mxu0
  %162 = vmatprep.mubr.f32.mxu0 0.0
  %163 = vmatmul.mubr.f32.gmra.mrb[0].mxu0 %v47
  %v164 = vpop.f32.mrb[0].mxu0
  %v165 = vadd.f32 %v38, %v164
  %v166 = vpop.f32.mrb[0].mxu0
  %167 = vmatprep.mubr.f32.mxu0 0.0
  %168 = vmatmul.mubr.f32.gmra.mrb[0].mxu0 %v50
  %v169 = vpop.f32.mrb[0].mxu0
  %v170 = vadd.f32 %v38, %v169
  %v171 = vpop.f32.mrb[0].mxu0
  %172 = vmatprep.mubr.f32.mxu0 0.0
  %173 = vmatmul.mubr.f32.gmra.mrb[0].mxu0 %v53
  %v174 = vpop.f32.mrb[0].mxu0
  %v175 = vadd.f32 %v38, %v174
  %v176 = vpop.f32.mrb[0].mxu0
  %177 = vmatprep.mubr.f32.mxu0 0.0
  %178 = vmatmul.mubr.f32.gmra.mrb[0].mxu0 %v56
  %v179 = vpop.f32.mrb[0].mxu0
  %v180 = vadd.f32 %v38, %v179
  %v181 = vpop.f32.mrb[0].mxu0
  %182 = vmatprep.mubr.f32.mxu0 0.0
  %183 = vmatmul.mubr.f32.gmra.mrb[0].mxu0 %v59
  %v184 = vpop.f32.mrb[0].mxu0
  %v185 = vadd.f32 %v38, %v184
  %v186 = vpop.f32.mrb[0].mxu0
  %187 = vmatprep.mubr.f32.mxu0 0.0
  %188 = vmatmul.mubr.f32.gmra.mrb[0].mxu0 %v62
  %v189 = vpop.f32.mrb[0].mxu0
  %v190 = vadd.f32 %v38, %v189
  %v191 = vpop.f32.mrb[0].mxu0
  %192 = vmatprep.mubr.f32.mxu0 0.0
  %193 = vmatmul.mubr.f32.gmra.mrb[0].mxu0 %v65
  %v194 = vpop.f32.mrb[0].mxu0
  %v195 = vadd.f32 %v38, %v194
  %v196 = vpop.f32.mrb[0].mxu0
  %197 = vmatprep.mubr.f32.mxu0 0.0
  %198 = vmatmul.mubr.f32.gmra.mrb[0].mxu0 %v68
  %v199 = vpop.f32.mrb[0].mxu0
  %v200 = vadd.f32 %v38, %v199
  %v201 = vpop.f32.mrb[0].mxu0
  %202 = vmatprep.mubr.f32.mxu0 0.0
  %203 = vmatmul.mubr.f32.gmra.mrb[0].mxu0 %v71
  %v204 = vpop.f32.mrb[0].mxu0
  %v205 = vadd.f32 %v38, %v204
  %v206 = vpop.f32.mrb[0].mxu0
  %207 = vmatprep.mubr.f32.mxu0 0.0
  %208 = vmatmul.mubr.f32.gmra.mrb[0].mxu0 %v74
  %v209 = vpop.f32.mrb[0].mxu0
  %v210 = vadd.f32 %v38, %v209
  %v211 = vpop.f32.mrb[0].mxu0
  %212 = vmatprep.mubr.f32.mxu0 0.0
  %213 = vmatmul.mubr.f32.gmra.mrb[0].mxu0 %v77
  %v214 = vpop.f32.mrb[0].mxu0
  %v215 = vadd.f32 %v38, %v214
  %v216 = vpop.f32.mrb[0].mxu0
  %217 = vmatprep.mubr.f32.mxu0 0.0
  %218 = vmatmul.mubr.f32.gmra.mrb[0].mxu0 %v80
  %v219 = vpop.f32.mrb[0].mxu0
  %v220 = vadd.f32 %v38, %v219
  %v221 = vpop.f32.mrb[0].mxu0
  %222 = vmatprep.mubr.f32.mxu0 0.0
  %223 = vmatmul.mubr.f32.gmra.mrb[0].mxu0 %v83
  %v224 = vpop.f32.mrb[0].mxu0
  %v225 = vadd.f32 %v38, %v224
  %v226 = vpop.f32.mrb[0].mxu0
  %227 = vmatprep.mubr.f32.mxu0 0.0
  %228 = vmatmul.mubr.f32.gmra.mrb[0].mxu0 %v86
  %v229 = vpop.f32.mrb[0].mxu0
  %v230 = vadd.f32 %v38, %v229
  %v231 = vpop.f32.mrb[0].mxu0
  %232 = vdwg.mxu0
  %v233 = vld [vmem:[%s2 + $0x1] sm:$0x1]
  %v234 = vld [vmem:[%s2 + $0x2] sm:$0x1]
  %vm235 = vcmask 130048
  %v236 = vsel %vm235, %v155, 0.0
  %237 = vadd.xlane.f32.xlu0 %v236
  %v238 = vpop.xlane.xlu0 %237
  %v239 = vsel %vm235, %v160, 0.0
  %240 = vadd.xlane.f32.xlu0 %v239
  %v241 = vpop.xlane.xlu0 %240
  %v242 = vsel %vm235, %v165, 0.0
  %243 = vadd.xlane.f32.xlu0 %v242
  %v244 = vpop.xlane.xlu0 %243
  %v245 = vsel %vm235, %v170, 0.0
  %246 = vadd.xlane.f32.xlu0 %v245
  %v247 = vpop.xlane.xlu0 %246
  %v248 = vsel %vm235, %v175, 0.0
  %249 = vadd.xlane.f32.xlu0 %v248
  %v250 = vpop.xlane.xlu0 %249
  %v251 = vsel %vm235, %v180, 0.0
  %252 = vadd.xlane.f32.xlu0 %v251
  %v253 = vpop.xlane.xlu0 %252
  %v254 = vsel %vm235, %v185, 0.0
  %255 = vadd.xlane.f32.xlu0 %v254
  %v256 = vpop.xlane.xlu0 %255
  %v257 = vsel %vm235, %v190, 0.0
  %258 = vadd.xlane.f32.xlu0 %v257
  %v259 = vpop.xlane.xlu0 %258
  %v260 = vsel %vm235, %v195, 0.0
  %261 = vadd.xlane.f32.xlu0 %v260
  %v262 = vpop.xlane.xlu0 %261
  %v263 = vsel %vm235, %v200, 0.0
  %264 = vadd.xlane.f32.xlu0 %v263
  %v265 = vpop.xlane.xlu0 %264
  %v266 = vsel %vm235, %v205, 0.0
  %267 = vadd.xlane.f32.xlu0 %v266
  %v268 = vpop.xlane.xlu0 %267
  %v269 = vsel %vm235, %v210, 0.0
  %270 = vadd.xlane.f32.xlu0 %v269
  %v271 = vpop.xlane.xlu0 %270
  %v272 = vsel %vm235, %v215, 0.0
  %273 = vadd.xlane.f32.xlu0 %v272
  %v274 = vpop.xlane.xlu0 %273
  %v275 = vsel %vm235, %v220, 0.0
  %276 = vadd.xlane.f32.xlu0 %v275
  %v277 = vpop.xlane.xlu0 %276
  %v278 = vsel %vm235, %v225, 0.0
  %279 = vadd.xlane.f32.xlu0 %v278
  %v280 = vpop.xlane.xlu0 %279
  %v281 = vsel %vm235, %v230, 0.0
  %282 = vadd.xlane.f32.xlu0 %v281
  %v283 = vpop.xlane.xlu0 %282
  %v284 = vmul.f32 %v238, 0.0625
  %v285 = vmul.f32 %v241, 0.0625
  %v286 = vmul.f32 %v244, 0.0625
  %v287 = vmul.f32 %v247, 0.0625
  %v288 = vmul.f32 %v250, 0.0625
  %v289 = vmul.f32 %v253, 0.0625
  %v290 = vmul.f32 %v256, 0.0625
  %v291 = vmul.f32 %v259, 0.0625
  %v292 = vmul.f32 %v262, 0.0625
  %v293 = vmul.f32 %v265, 0.0625
  %v294 = vmul.f32 %v268, 0.0625
  %v295 = vmul.f32 %v271, 0.0625
  %v296 = vmul.f32 %v274, 0.0625
  %v297 = vmul.f32 %v277, 0.0625
  %v298 = vmul.f32 %v280, 0.0625
  %v299 = vmul.f32 %v283, 0.0625
  %v300 = vsub.f32 %v155, %v284
  %v301 = vsub.f32 %v160, %v285
  %v302 = vsub.f32 %v165, %v286
  %v303 = vsub.f32 %v170, %v287
  %v304 = vsub.f32 %v175, %v288
  %v305 = vsub.f32 %v180, %v289
  %v306 = vsub.f32 %v185, %v290
  %v307 = vsub.f32 %v190, %v291
  %v308 = vsub.f32 %v195, %v292
  %v309 = vsub.f32 %v200, %v293
  %v310 = vsub.f32 %v205, %v294
  %v311 = vsub.f32 %v210, %v295
  %v312 = vsub.f32 %v215, %v296
  %v313 = vsub.f32 %v220, %v297
  %v314 = vsub.f32 %v225, %v298
  %v315 = vsub.f32 %v230, %v299
  %v316 = vmul.f32 %v300, %v300
  %v317 = vmul.f32 %v301, %v301
  %v318 = vmul.f32 %v302, %v302
  %v319 = vmul.f32 %v303, %v303
  %v320 = vmul.f32 %v304, %v304
  %v321 = vmul.f32 %v305, %v305
  %v322 = vmul.f32 %v306, %v306
  %v323 = vmul.f32 %v307, %v307
  %v324 = vmul.f32 %v308, %v308
  %v325 = vmul.f32 %v309, %v309
  %v326 = vmul.f32 %v310, %v310
  %v327 = vmul.f32 %v311, %v311
  %v328 = vmul.f32 %v312, %v312
  %v329 = vmul.f32 %v313, %v313
  %v330 = vmul.f32 %v314, %v314
  %v331 = vmul.f32 %v315, %v315
  %v332 = vsel %vm235, %v316, 0.0
  %333 = vadd.xlane.f32.xlu0 %v332
  %v334 = vpop.xlane.xlu0 %333
  %v335 = vsel %vm235, %v317, 0.0
  %336 = vadd.xlane.f32.xlu0 %v335
  %v337 = vpop.xlane.xlu0 %336
  %v338 = vsel %vm235, %v318, 0.0
  %339 = vadd.xlane.f32.xlu0 %v338
  %v340 = vpop.xlane.xlu0 %339
  %v341 = vsel %vm235, %v319, 0.0
  %342 = vadd.xlane.f32.xlu0 %v341
  %v343 = vpop.xlane.xlu0 %342
  %v344 = vsel %vm235, %v320, 0.0
  %345 = vadd.xlane.f32.xlu0 %v344
  %v346 = vpop.xlane.xlu0 %345
  %v347 = vsel %vm235, %v321, 0.0
  %348 = vadd.xlane.f32.xlu0 %v347
  %v349 = vpop.xlane.xlu0 %348
  %v350 = vsel %vm235, %v322, 0.0
  %351 = vadd.xlane.f32.xlu0 %v350
  %v352 = vpop.xlane.xlu0 %351
  %v353 = vsel %vm235, %v323, 0.0
  %354 = vadd.xlane.f32.xlu0 %v353
  %v355 = vpop.xlane.xlu0 %354
  %v356 = vsel %vm235, %v324, 0.0
  %357 = vadd.xlane.f32.xlu0 %v356
  %v358 = vpop.xlane.xlu0 %357
  %v359 = vsel %vm235, %v325, 0.0
  %360 = vadd.xlane.f32.xlu0 %v359
  %v361 = vpop.xlane.xlu0 %360
  %v362 = vsel %vm235, %v326, 0.0
  %363 = vadd.xlane.f32.xlu0 %v362
  %v364 = vpop.xlane.xlu0 %363
  %v365 = vsel %vm235, %v327, 0.0
  %366 = vadd.xlane.f32.xlu0 %v365
  %v367 = vpop.xlane.xlu0 %366
  %v368 = vsel %vm235, %v328, 0.0
  %369 = vadd.xlane.f32.xlu0 %v368
  %v370 = vpop.xlane.xlu0 %369
  %v371 = vsel %vm235, %v329, 0.0
  %372 = vadd.xlane.f32.xlu0 %v371
  %v373 = vpop.xlane.xlu0 %372
  %v374 = vsel %vm235, %v330, 0.0
  %375 = vadd.xlane.f32.xlu0 %v374
  %v376 = vpop.xlane.xlu0 %375
  %v377 = vsel %vm235, %v331, 0.0
  %378 = vadd.xlane.f32.xlu0 %v377
  %v379 = vpop.xlane.xlu0 %378
  %v380 = vmul.f32 %v334, 0.0625
  %v381 = vmul.f32 %v337, 0.0625
  %v382 = vmul.f32 %v340, 0.0625
  %v383 = vmul.f32 %v343, 0.0625
  %v384 = vmul.f32 %v346, 0.0625
  %v385 = vmul.f32 %v349, 0.0625
  %v386 = vmul.f32 %v352, 0.0625
  %v387 = vmul.f32 %v355, 0.0625
  %v388 = vmul.f32 %v358, 0.0625
  %v389 = vmul.f32 %v361, 0.0625
  %v390 = vmul.f32 %v364, 0.0625
  %v391 = vmul.f32 %v367, 0.0625
  %v392 = vmul.f32 %v370, 0.0625
  %v393 = vmul.f32 %v373, 0.0625
  %v394 = vmul.f32 %v376, 0.0625
  %v395 = vmul.f32 %v379, 0.0625
  %v396 = vadd.f32 %v380, 1e-05
  %v397 = vadd.f32 %v381, 1e-05
  %v398 = vadd.f32 %v382, 1e-05
  %v399 = vadd.f32 %v383, 1e-05
  %v400 = vadd.f32 %v384, 1e-05
  %v401 = vadd.f32 %v385, 1e-05
  %v402 = vadd.f32 %v386, 1e-05
  %v403 = vadd.f32 %v387, 1e-05
  %v404 = vadd.f32 %v388, 1e-05
  %v405 = vadd.f32 %v389, 1e-05
  %v406 = vadd.f32 %v390, 1e-05
  %v407 = vadd.f32 %v391, 1e-05
  %v408 = vadd.f32 %v392, 1e-05
  %v409 = vadd.f32 %v393, 1e-05
  %v410 = vadd.f32 %v394, 1e-05
  %v411 = vadd.f32 %v395, 1e-05
  %v412 = vrsqrt.pop %v396
  %v413 = vrsqrt.pop %v397
  %v414 = vrsqrt.pop %v398
  %v415 = vrsqrt.pop %v399
  %v416 = vrsqrt.pop %v400
  %v417 = vrsqrt.pop %v401
  %v418 = vrsqrt.pop %v402
  %v419 = vrsqrt.pop %v403
  %v420 = vrsqrt.pop %v404
  %v421 = vrsqrt.pop %v405
  %v422 = vrsqrt.pop %v406
  %v423 = vrsqrt.pop %v407
  %v424 = vrsqrt.pop %v408
  %v425 = vrsqrt.pop %v409
  %v426 = vrsqrt.pop %v410
  %v427 = vrsqrt.pop %v411
  %v428 = vmul.f32 %v300, %v412
  %v429 = vmul.f32 %v301, %v413
  %v430 = vmul.f32 %v302, %v414
  %v431 = vmul.f32 %v303, %v415
  %v432 = vmul.f32 %v304, %v416
  %v433 = vmul.f32 %v305, %v417
  %v434 = vmul.f32 %v306, %v418
  %v435 = vmul.f32 %v307, %v419
  %v436 = vmul.f32 %v308, %v420
  %v437 = vmul.f32 %v309, %v421
  %v438 = vmul.f32 %v310, %v422
  %v439 = vmul.f32 %v311, %v423
  %v440 = vmul.f32 %v312, %v424
  %v441 = vmul.f32 %v313, %v425
  %v442 = vmul.f32 %v314, %v426
  %v443 = vmul.f32 %v315, %v427
  %v444 = vlaneseq
  %v445 = vshrl.u32 %v444, 7
  %v446 = vsub.s32 0, %v445
  %v447 = vrot.slane %v233, %v446
  %v448 = vmul.f32 %v428, %v447
  %v449 = vmul.f32 %v429, %v447
  %v450 = vmul.f32 %v430, %v447
  %v451 = vmul.f32 %v431, %v447
  %v452 = vmul.f32 %v432, %v447
  %v453 = vmul.f32 %v433, %v447
  %v454 = vmul.f32 %v434, %v447
  %v455 = vmul.f32 %v435, %v447
  %v456 = vmul.f32 %v436, %v447
  %v457 = vmul.f32 %v437, %v447
  %v458 = vmul.f32 %v438, %v447
  %v459 = vmul.f32 %v439, %v447
  %v460 = vmul.f32 %v440, %v447
  %v461 = vmul.f32 %v441, %v447
  %v462 = vmul.f32 %v442, %v447
  %v463 = vmul.f32 %v443, %v447
  %v464 = vlaneseq
  %v465 = vshrl.u32 %v464, 7
  %v466 = vsub.s32 0, %v465
  %v467 = vrot.slane %v234, %v466
  %v468 = vadd.f32 %v448, %v467
  %v469 = vadd.f32 %v449, %v467
  %v470 = vadd.f32 %v450, %v467
  %v471 = vadd.f32 %v451, %v467
  %v472 = vadd.f32 %v452, %v467
  %v473 = vadd.f32 %v453, %v467
  %v474 = vadd.f32 %v454, %v467
  %v475 = vadd.f32 %v455, %v467
  %v476 = vadd.f32 %v456, %v467
  %v477 = vadd.f32 %v457, %v467
  %v478 = vadd.f32 %v458, %v467
  %v479 = vadd.f32 %v459, %v467
  %v480 = vadd.f32 %v460, %v467
  %v481 = vadd.f32 %v461, %v467
  %v482 = vadd.f32 %v462, %v467
  %v483 = vadd.f32 %v463, %v467
  %484 = vst.msk [vmem:[%s3] sm:$0xff] %vm235, %v468
  %485 = vst.msk [vmem:[%s3 + $0x8] sm:$0xff] %vm235, %v469
  %486 = vst.msk [vmem:[%s3 + $0x10] sm:$0xff] %vm235, %v470
  %487 = vst.msk [vmem:[%s3 + $0x18] sm:$0xff] %vm235, %v471
  %488 = vst.msk [vmem:[%s3 + $0x20] sm:$0xff] %vm235, %v472
  %489 = vst.msk [vmem:[%s3 + $0x28] sm:$0xff] %vm235, %v473
  %490 = vst.msk [vmem:[%s3 + $0x30] sm:$0xff] %vm235, %v474
  %491 = vst.msk [vmem:[%s3 + $0x38] sm:$0xff] %vm235, %v475
  %492 = vst.msk [vmem:[%s3 + $0x40] sm:$0xff] %vm235, %v476
  %493 = vst.msk [vmem:[%s3 + $0x48] sm:$0xff] %vm235, %v477
  %494 = vst.msk [vmem:[%s3 + $0x50] sm:$0xff] %vm235, %v478
  %495 = vst.msk [vmem:[%s3 + $0x58] sm:$0xff] %vm235, %v479
  %496 = vst.msk [vmem:[%s3 + $0x60] sm:$0xff] %vm235, %v480
  %497 = vst.msk [vmem:[%s3 + $0x68] sm:$0xff] %vm235, %v481
  %498 = vst.msk [vmem:[%s3 + $0x70] sm:$0xff] %vm235, %v482
  %499 = vst.msk [vmem:[%s3 + $0x78] sm:$0xff] %vm235, %v483
  // Predicated region
  $region14: #{tpu_custom_call.1} parent=0 // pred_check
    _
  $region15: #{tpu_custom_call.1} parent=0 // pred_check_branch
    %501 = sbr.rel (0) target = $region17
  $region16: #{tpu_custom_call.1} parent=0 // pred_region
    _
  $region17: #{tpu_custom_call.1} parent=0 // pred_fallthru
    _
  // Predicated region
  $region18: #{tpu_custom_call.1} parent=0 // pred_check
    _
  $region19: #{tpu_custom_call.1} parent=0 // pred_check_branch
    %503 = sbr.rel (0) target = $region21
  $region20: #{tpu_custom_call.1} parent=0 // pred_region
    _
  $region21: #{tpu_custom_call.1} parent=0 // pred_fallthru
    _

// kernel: tpu_custom_call.1
$region0: #{tpu_custom_call.1}
  #allocation0 [shape = 'u32[]', space=smem, size = 0x4, offset = 0x4, fixed_abs, tag = 'smem constant byte address 0x4 - core index']
  #allocation1 [shape = 'u32[144,128]{1,0:T(1,128)}', space=vmem, size = 0x12000, scoped, tag = 'internal scratch']
  %s0 = inlined_call_operand.vmem [shape: f32[128,32], index: 0, kind: input, shape index: {}]
  %s1 = inlined_call_operand.vmem [shape: f32[32,16], index: 1, kind: input, shape index: {}]
  %s2 = inlined_call_operand.vmem [shape: f32[8,16], index: 2, kind: input, shape index: {}]
  %s3 = inlined_call_operand.vmem [shape: f32[128,16], index: 3, kind: output, shape index: {}]
  %s4 = sld [smem:[#allocation0]]
  $region22: #{tpu_custom_call.1} parent=0
    _
  %s6 = ssub.s32 1, %s4
  %s7 = scalar_select 0, %s6, %s4
  // Predicated region
  $region2: #{tpu_custom_call.1} parent=0 // pred_check
    _
  $region3: #{tpu_custom_call.1} parent=0 // pred_check_branch
    %9 = sbr.rel (0) target = $region5
  $region4: #{tpu_custom_call.1} parent=0 // pred_region
    _
  $region5: #{tpu_custom_call.1} parent=0 // pred_fallthru
    _
  // Predicated region
  $region6: #{tpu_custom_call.1} parent=0 // pred_check
    _
  $region7: #{tpu_custom_call.1} parent=0 // pred_check_branch
    %11 = sbr.rel (0) target = $region9
  $region8: #{tpu_custom_call.1} parent=0 // pred_region
    _
  $region9: #{tpu_custom_call.1} parent=0 // pred_fallthru
    _
  // Predicated region
  $region10: #{tpu_custom_call.1} parent=0 // pred_check
    _
  $region11: #{tpu_custom_call.1} parent=0 // pred_check_branch
    %13 = sbr.rel (0) target = $region13
  $region12: #{tpu_custom_call.1} parent=0 // pred_region
    _
  $region13: #{tpu_custom_call.1} parent=0 // pred_fallthru
    _
  %v14 = vld [vmem:[%s2] sm:$0x1]
  %v15 = vld [vmem:[%s0] sm:$0xff]
  %v16 = vld [vmem:[%s0 + $0x8] sm:$0xff]
  %v17 = vld [vmem:[%s0 + $0x10] sm:$0xff]
  %v18 = vld [vmem:[%s0 + $0x18] sm:$0xff]
  %v19 = vld [vmem:[%s0 + $0x20] sm:$0xff]
  %v20 = vld [vmem:[%s0 + $0x28] sm:$0xff]
  %v21 = vld [vmem:[%s0 + $0x30] sm:$0xff]
  %v22 = vld [vmem:[%s0 + $0x38] sm:$0xff]
  %v23 = vld [vmem:[%s0 + $0x40] sm:$0xff]
  %v24 = vld [vmem:[%s0 + $0x48] sm:$0xff]
  %v25 = vld [vmem:[%s0 + $0x50] sm:$0xff]
  %v26 = vld [vmem:[%s0 + $0x58] sm:$0xff]
  %v27 = vld [vmem:[%s0 + $0x60] sm:$0xff]
  %v28 = vld [vmem:[%s0 + $0x68] sm:$0xff]
  %v29 = vld [vmem:[%s0 + $0x70] sm:$0xff]
  %v30 = vld [vmem:[%s0 + $0x78] sm:$0xff]
  %v31 = vld [vmem:[%s1] sm:$0xff]
  %v32 = vld [vmem:[%s1 + $0x8] sm:$0xff]
  %v33 = vld [vmem:[%s1 + $0x10] sm:$0xff]
  %v34 = vld [vmem:[%s1 + $0x18] sm:$0xff]
  %v35 = vlaneseq
  %v36 = vshrl.u32 %v35, 7
  %v37 = vsub.s32 0, %v36
  %v38 = vrot.slane %v14, %v37
  %vm39 = vcmask 261120
  %v41 = vsel %vm39, %v15, 0
  %v44 = vsel %vm39, %v16, 0
  %v47 = vsel %vm39, %v17, 0
  %v50 = vsel %vm39, %v18, 0
  %v53 = vsel %vm39, %v19, 0
  %v56 = vsel %vm39, %v20, 0
  %v59 = vsel %vm39, %v21, 0
  %v62 = vsel %vm39, %v22, 0
  %v65 = vsel %vm39, %v23, 0
  %v68 = vsel %vm39, %v24, 0
  %v71 = vsel %vm39, %v25, 0
  %v74 = vsel %vm39, %v26, 0
  %v77 = vsel %vm39, %v27, 0
  %v80 = vsel %vm39, %v28, 0
  %v83 = vsel %vm39, %v29, 0
  %v86 = vsel %vm39, %v30, 0
  %88 = vmatprep.subr.mxu0 0.0
  %89 = vmatpush1.msra.mxu0 %v31
  %90 = vmatprep.subr.mxu0 0.0
  %91 = vmatpush1.msra.mxu0 %v32
  %92 = vmatprep.subr.mxu0 0.0
  %93 = vmatpush1.msra.mxu0 %v33
  %94 = vmatprep.subr.mxu0 0.0
  %95 = vmatpush1.msra.mxu0 %v34
  %96 = vmatprep.subr.mxu0 0.0
  %97 = vmatpush1.msra.mxu0 0.0
  %98 = vmatprep.subr.mxu0 0.0
  %99 = vmatpush1.msra.mxu0 0.0
  %100 = vmatprep.subr.mxu0 0.0
  %101 = vmatpush1.msra.mxu0 0.0
  %102 = vmatprep.subr.mxu0 0.0
  %103 = vmatpush1.msra.mxu0 0.0
  %104 = vmatprep.subr.mxu0 0.0
  %105 = vmatpush1.msra.mxu0 0.0
  %106 = vmatprep.subr.mxu0 0.0
  %107 = vmatpush1.msra.mxu0 0.0
  %108 = vmatprep.subr.mxu0 0.0
  %109 = vmatpush1.msra.mxu0 0.0
  %110 = vmatprep.subr.mxu0 0.0
  %111 = vmatpush1.msra.mxu0 0.0
  %112 = vmatprep.subr.mxu0 0.0
  %113 = vmatpush1.msra.mxu0 0.0
  %114 = vmatprep.subr.mxu0 0.0
  %115 = vmatpush1.msra.mxu0 0.0
  %116 = vmatprep.subr.mxu0 0.0
  %117 = vmatpush1.msra.mxu0 0.0
  %118 = vmatprep.subr.mxu0 0.0
  %119 = vmatpush1.msra.mxu0 0.0
  %120 = vmatprep.subr.mxu0 0.0
  %121 = vmatpush1.msra.mxu0 0.0
  %122 = vmatprep.subr.mxu0 0.0
  %123 = vmatpush1.msra.mxu0 0.0
  %124 = vmatprep.subr.mxu0 0.0
  %125 = vmatpush1.msra.mxu0 0.0
  %126 = vmatprep.subr.mxu0 0.0
  %127 = vmatpush1.msra.mxu0 0.0
  %128 = vmatprep.subr.mxu0 0.0
  %129 = vmatpush1.msra.mxu0 0.0
  %130 = vmatprep.subr.mxu0 0.0
  %131 = vmatpush1.msra.mxu0 0.0
  %132 = vmatprep.subr.mxu0 0.0
  %133 = vmatpush1.msra.mxu0 0.0
  %134 = vmatprep.subr.mxu0 0.0
  %135 = vmatpush1.msra.mxu0 0.0
  %136 = vmatprep.subr.mxu0 0.0
  %137 = vmatpush1.msra.mxu0 0.0
  %138 = vmatprep.subr.mxu0 0.0
  %139 = vmatpush1.msra.mxu0 0.0
  %140 = vmatprep.subr.mxu0 0.0
  %141 = vmatpush1.msra.mxu0 0.0
  %142 = vmatprep.subr.mxu0 0.0
  %143 = vmatpush1.msra.mxu0 0.0
  %144 = vmatprep.subr.mxu0 0.0
  %145 = vmatpush1.msra.mxu0 0.0
  %146 = vmatprep.subr.mxu0 0.0
  %147 = vmatpush1.msra.mxu0 0.0
  %148 = vmatprep.subr.mxu0 0.0
  %149 = vmatpush1.msra.mxu0 0.0
  %150 = vmatprep.subr.mxu0 0.0
  %151 = vmatpush1.msra.mxu0 0.0
  %152 = vmatprep.mubr.f32.mxu0 0.0
  %153 = vmatmul.mubr.f32.gmra.mrb[0].mxu0 %v41
  %v154 = vpop.f32.mrb[0].mxu0
  %v155 = vadd.f32 %v38, %v154
  %v156 = vpop.f32.mrb[0].mxu0
  %157 = vmatprep.mubr.f32.mxu0 0.0
  %158 = vmatmul.mubr.f32.gmra.mrb[0].mxu0 %v44
  %v159 = vpop.f32.mrb[0].mxu0
  %v160 = vadd.f32 %v38, %v159
  %v161 = vpop.f32.mrb[0].mxu0
  %162 = vmatprep.mubr.f32.mxu0 0.0
  %163 = vmatmul.mubr.f32.gmra.mrb[0].mxu0 %v47
  %v164 = vpop.f32.mrb[0].mxu0
  %v165 = vadd.f32 %v38, %v164
  %v166 = vpop.f32.mrb[0].mxu0
  %167 = vmatprep.mubr.f32.mxu0 0.0
  %168 = vmatmul.mubr.f32.gmra.mrb[0].mxu0 %v50
  %v169 = vpop.f32.mrb[0].mxu0
  %v170 = vadd.f32 %v38, %v169
  %v171 = vpop.f32.mrb[0].mxu0
  %172 = vmatprep.mubr.f32.mxu0 0.0
  %173 = vmatmul.mubr.f32.gmra.mrb[0].mxu0 %v53
  %v174 = vpop.f32.mrb[0].mxu0
  %v175 = vadd.f32 %v38, %v174
  %v176 = vpop.f32.mrb[0].mxu0
  %177 = vmatprep.mubr.f32.mxu0 0.0
  %178 = vmatmul.mubr.f32.gmra.mrb[0].mxu0 %v56
  %v179 = vpop.f32.mrb[0].mxu0
  %v180 = vadd.f32 %v38, %v179
  %v181 = vpop.f32.mrb[0].mxu0
  %182 = vmatprep.mubr.f32.mxu0 0.0
  %183 = vmatmul.mubr.f32.gmra.mrb[0].mxu0 %v59
  %v184 = vpop.f32.mrb[0].mxu0
  %v185 = vadd.f32 %v38, %v184
  %v186 = vpop.f32.mrb[0].mxu0
  %187 = vmatprep.mubr.f32.mxu0 0.0
  %188 = vmatmul.mubr.f32.gmra.mrb[0].mxu0 %v62
  %v189 = vpop.f32.mrb[0].mxu0
  %v190 = vadd.f32 %v38, %v189
  %v191 = vpop.f32.mrb[0].mxu0
  %192 = vmatprep.mubr.f32.mxu0 0.0
  %193 = vmatmul.mubr.f32.gmra.mrb[0].mxu0 %v65
  %v194 = vpop.f32.mrb[0].mxu0
  %v195 = vadd.f32 %v38, %v194
  %v196 = vpop.f32.mrb[0].mxu0
  %197 = vmatprep.mubr.f32.mxu0 0.0
  %198 = vmatmul.mubr.f32.gmra.mrb[0].mxu0 %v68
  %v199 = vpop.f32.mrb[0].mxu0
  %v200 = vadd.f32 %v38, %v199
  %v201 = vpop.f32.mrb[0].mxu0
  %202 = vmatprep.mubr.f32.mxu0 0.0
  %203 = vmatmul.mubr.f32.gmra.mrb[0].mxu0 %v71
  %v204 = vpop.f32.mrb[0].mxu0
  %v205 = vadd.f32 %v38, %v204
  %v206 = vpop.f32.mrb[0].mxu0
  %207 = vmatprep.mubr.f32.mxu0 0.0
  %208 = vmatmul.mubr.f32.gmra.mrb[0].mxu0 %v74
  %v209 = vpop.f32.mrb[0].mxu0
  %v210 = vadd.f32 %v38, %v209
  %v211 = vpop.f32.mrb[0].mxu0
  %212 = vmatprep.mubr.f32.mxu0 0.0
  %213 = vmatmul.mubr.f32.gmra.mrb[0].mxu0 %v77
  %v214 = vpop.f32.mrb[0].mxu0
  %v215 = vadd.f32 %v38, %v214
  %v216 = vpop.f32.mrb[0].mxu0
  %217 = vmatprep.mubr.f32.mxu0 0.0
  %218 = vmatmul.mubr.f32.gmra.mrb[0].mxu0 %v80
  %v219 = vpop.f32.mrb[0].mxu0
  %v220 = vadd.f32 %v38, %v219
  %v221 = vpop.f32.mrb[0].mxu0
  %222 = vmatprep.mubr.f32.mxu0 0.0
  %223 = vmatmul.mubr.f32.gmra.mrb[0].mxu0 %v83
  %v224 = vpop.f32.mrb[0].mxu0
  %v225 = vadd.f32 %v38, %v224
  %v226 = vpop.f32.mrb[0].mxu0
  %227 = vmatprep.mubr.f32.mxu0 0.0
  %228 = vmatmul.mubr.f32.gmra.mrb[0].mxu0 %v86
  %v229 = vpop.f32.mrb[0].mxu0
  %v230 = vadd.f32 %v38, %v229
  %v231 = vpop.f32.mrb[0].mxu0
  %232 = vdwg.mxu0
  %v233 = vld [vmem:[%s2 + $0x1] sm:$0x1]
  %v234 = vld [vmem:[%s2 + $0x2] sm:$0x1]
  %vm235 = vcmask 130048
  %v236 = vsel %vm235, %v155, 0.0
  %237 = vadd.xlane.f32.xlu0 %v236
  %v238 = vpop.xlane.xlu0 %237
  %v239 = vsel %vm235, %v160, 0.0
  %240 = vadd.xlane.f32.xlu0 %v239
  %v241 = vpop.xlane.xlu0 %240
  %v242 = vsel %vm235, %v165, 0.0
  %243 = vadd.xlane.f32.xlu0 %v242
  %v244 = vpop.xlane.xlu0 %243
  %v245 = vsel %vm235, %v170, 0.0
  %246 = vadd.xlane.f32.xlu0 %v245
  %v247 = vpop.xlane.xlu0 %246
  %v248 = vsel %vm235, %v175, 0.0
  %249 = vadd.xlane.f32.xlu0 %v248
  %v250 = vpop.xlane.xlu0 %249
  %v251 = vsel %vm235, %v180, 0.0
  %252 = vadd.xlane.f32.xlu0 %v251
  %v253 = vpop.xlane.xlu0 %252
  %v254 = vsel %vm235, %v185, 0.0
  %255 = vadd.xlane.f32.xlu0 %v254
  %v256 = vpop.xlane.xlu0 %255
  %v257 = vsel %vm235, %v190, 0.0
  %258 = vadd.xlane.f32.xlu0 %v257
  %v259 = vpop.xlane.xlu0 %258
  %v260 = vsel %vm235, %v195, 0.0
  %261 = vadd.xlane.f32.xlu0 %v260
  %v262 = vpop.xlane.xlu0 %261
  %v263 = vsel %vm235, %v200, 0.0
  %264 = vadd.xlane.f32.xlu0 %v263
  %v265 = vpop.xlane.xlu0 %264
  %v266 = vsel %vm235, %v205, 0.0
  %267 = vadd.xlane.f32.xlu0 %v266
  %v268 = vpop.xlane.xlu0 %267
  %v269 = vsel %vm235, %v210, 0.0
  %270 = vadd.xlane.f32.xlu0 %v269
  %v271 = vpop.xlane.xlu0 %270
  %v272 = vsel %vm235, %v215, 0.0
  %273 = vadd.xlane.f32.xlu0 %v272
  %v274 = vpop.xlane.xlu0 %273
  %v275 = vsel %vm235, %v220, 0.0
  %276 = vadd.xlane.f32.xlu0 %v275
  %v277 = vpop.xlane.xlu0 %276
  %v278 = vsel %vm235, %v225, 0.0
  %279 = vadd.xlane.f32.xlu0 %v278
  %v280 = vpop.xlane.xlu0 %279
  %v281 = vsel %vm235, %v230, 0.0
  %282 = vadd.xlane.f32.xlu0 %v281
  %v283 = vpop.xlane.xlu0 %282
  %v284 = vmul.f32 %v238, 0.0625
  %v285 = vmul.f32 %v241, 0.0625
  %v286 = vmul.f32 %v244, 0.0625
  %v287 = vmul.f32 %v247, 0.0625
  %v288 = vmul.f32 %v250, 0.0625
  %v289 = vmul.f32 %v253, 0.0625
  %v290 = vmul.f32 %v256, 0.0625
  %v291 = vmul.f32 %v259, 0.0625
  %v292 = vmul.f32 %v262, 0.0625
  %v293 = vmul.f32 %v265, 0.0625
  %v294 = vmul.f32 %v268, 0.0625
  %v295 = vmul.f32 %v271, 0.0625
  %v296 = vmul.f32 %v274, 0.0625
  %v297 = vmul.f32 %v277, 0.0625
  %v298 = vmul.f32 %v280, 0.0625
  %v299 = vmul.f32 %v283, 0.0625
  %v300 = vsub.f32 %v155, %v284
  %v301 = vsub.f32 %v160, %v285
  %v302 = vsub.f32 %v165, %v286
  %v303 = vsub.f32 %v170, %v287
  %v304 = vsub.f32 %v175, %v288
  %v305 = vsub.f32 %v180, %v289
  %v306 = vsub.f32 %v185, %v290
  %v307 = vsub.f32 %v190, %v291
  %v308 = vsub.f32 %v195, %v292
  %v309 = vsub.f32 %v200, %v293
  %v310 = vsub.f32 %v205, %v294
  %v311 = vsub.f32 %v210, %v295
  %v312 = vsub.f32 %v215, %v296
  %v313 = vsub.f32 %v220, %v297
  %v314 = vsub.f32 %v225, %v298
  %v315 = vsub.f32 %v230, %v299
  %v316 = vmul.f32 %v300, %v300
  %v317 = vmul.f32 %v301, %v301
  %v318 = vmul.f32 %v302, %v302
  %v319 = vmul.f32 %v303, %v303
  %v320 = vmul.f32 %v304, %v304
  %v321 = vmul.f32 %v305, %v305
  %v322 = vmul.f32 %v306, %v306
  %v323 = vmul.f32 %v307, %v307
  %v324 = vmul.f32 %v308, %v308
  %v325 = vmul.f32 %v309, %v309
  %v326 = vmul.f32 %v310, %v310
  %v327 = vmul.f32 %v311, %v311
  %v328 = vmul.f32 %v312, %v312
  %v329 = vmul.f32 %v313, %v313
  %v330 = vmul.f32 %v314, %v314
  %v331 = vmul.f32 %v315, %v315
  %v332 = vsel %vm235, %v316, 0.0
  %333 = vadd.xlane.f32.xlu0 %v332
  %v334 = vpop.xlane.xlu0 %333
  %v335 = vsel %vm235, %v317, 0.0
  %336 = vadd.xlane.f32.xlu0 %v335
  %v337 = vpop.xlane.xlu0 %336
  %v338 = vsel %vm235, %v318, 0.0
  %339 = vadd.xlane.f32.xlu0 %v338
  %v340 = vpop.xlane.xlu0 %339
  %v341 = vsel %vm235, %v319, 0.0
  %342 = vadd.xlane.f32.xlu0 %v341
  %v343 = vpop.xlane.xlu0 %342
  %v344 = vsel %vm235, %v320, 0.0
  %345 = vadd.xlane.f32.xlu0 %v344
  %v346 = vpop.xlane.xlu0 %345
  %v347 = vsel %vm235, %v321, 0.0
  %348 = vadd.xlane.f32.xlu0 %v347
  %v349 = vpop.xlane.xlu0 %348
  %v350 = vsel %vm235, %v322, 0.0
  %351 = vadd.xlane.f32.xlu0 %v350
  %v352 = vpop.xlane.xlu0 %351
  %v353 = vsel %vm235, %v323, 0.0
  %354 = vadd.xlane.f32.xlu0 %v353
  %v355 = vpop.xlane.xlu0 %354
  %v356 = vsel %vm235, %v324, 0.0
  %357 = vadd.xlane.f32.xlu0 %v356
  %v358 = vpop.xlane.xlu0 %357
  %v359 = vsel %vm235, %v325, 0.0
  %360 = vadd.xlane.f32.xlu0 %v359
  %v361 = vpop.xlane.xlu0 %360
  %v362 = vsel %vm235, %v326, 0.0
  %363 = vadd.xlane.f32.xlu0 %v362
  %v364 = vpop.xlane.xlu0 %363
  %v365 = vsel %vm235, %v327, 0.0
  %366 = vadd.xlane.f32.xlu0 %v365
  %v367 = vpop.xlane.xlu0 %366
  %v368 = vsel %vm235, %v328, 0.0
  %369 = vadd.xlane.f32.xlu0 %v368
  %v370 = vpop.xlane.xlu0 %369
  %v371 = vsel %vm235, %v329, 0.0
  %372 = vadd.xlane.f32.xlu0 %v371
  %v373 = vpop.xlane.xlu0 %372
  %v374 = vsel %vm235, %v330, 0.0
  %375 = vadd.xlane.f32.xlu0 %v374
  %v376 = vpop.xlane.xlu0 %375
  %v377 = vsel %vm235, %v331, 0.0
  %378 = vadd.xlane.f32.xlu0 %v377
  %v379 = vpop.xlane.xlu0 %378
  %v380 = vmul.f32 %v334, 0.0625
  %v381 = vmul.f32 %v337, 0.0625
  %v382 = vmul.f32 %v340, 0.0625
  %v383 = vmul.f32 %v343, 0.0625
  %v384 = vmul.f32 %v346, 0.0625
  %v385 = vmul.f32 %v349, 0.0625
  %v386 = vmul.f32 %v352, 0.0625
  %v387 = vmul.f32 %v355, 0.0625
  %v388 = vmul.f32 %v358, 0.0625
  %v389 = vmul.f32 %v361, 0.0625
  %v390 = vmul.f32 %v364, 0.0625
  %v391 = vmul.f32 %v367, 0.0625
  %v392 = vmul.f32 %v370, 0.0625
  %v393 = vmul.f32 %v373, 0.0625
  %v394 = vmul.f32 %v376, 0.0625
  %v395 = vmul.f32 %v379, 0.0625
  %v396 = vadd.f32 %v380, 1e-05
  %v397 = vadd.f32 %v381, 1e-05
  %v398 = vadd.f32 %v382, 1e-05
  %v399 = vadd.f32 %v383, 1e-05
  %v400 = vadd.f32 %v384, 1e-05
  %v401 = vadd.f32 %v385, 1e-05
  %v402 = vadd.f32 %v386, 1e-05
  %v403 = vadd.f32 %v387, 1e-05
  %v404 = vadd.f32 %v388, 1e-05
  %v405 = vadd.f32 %v389, 1e-05
  %v406 = vadd.f32 %v390, 1e-05
  %v407 = vadd.f32 %v391, 1e-05
  %v408 = vadd.f32 %v392, 1e-05
  %v409 = vadd.f32 %v393, 1e-05
  %v410 = vadd.f32 %v394, 1e-05
  %v411 = vadd.f32 %v395, 1e-05
  %v412 = vrsqrt.pop %v396
  %v413 = vrsqrt.pop %v397
  %v414 = vrsqrt.pop %v398
  %v415 = vrsqrt.pop %v399
  %v416 = vrsqrt.pop %v400
  %v417 = vrsqrt.pop %v401
  %v418 = vrsqrt.pop %v402
  %v419 = vrsqrt.pop %v403
  %v420 = vrsqrt.pop %v404
  %v421 = vrsqrt.pop %v405
  %v422 = vrsqrt.pop %v406
  %v423 = vrsqrt.pop %v407
  %v424 = vrsqrt.pop %v408
  %v425 = vrsqrt.pop %v409
  %v426 = vrsqrt.pop %v410
  %v427 = vrsqrt.pop %v411
  %v428 = vmul.f32 %v300, %v412
  %v429 = vmul.f32 %v301, %v413
  %v430 = vmul.f32 %v302, %v414
  %v431 = vmul.f32 %v303, %v415
  %v432 = vmul.f32 %v304, %v416
  %v433 = vmul.f32 %v305, %v417
  %v434 = vmul.f32 %v306, %v418
  %v435 = vmul.f32 %v307, %v419
  %v436 = vmul.f32 %v308, %v420
  %v437 = vmul.f32 %v309, %v421
  %v438 = vmul.f32 %v310, %v422
  %v439 = vmul.f32 %v311, %v423
  %v440 = vmul.f32 %v312, %v424
  %v441 = vmul.f32 %v313, %v425
  %v442 = vmul.f32 %v314, %v426
  %v443 = vmul.f32 %v315, %v427
  %v444 = vlaneseq
  %v445 = vshrl.u32 %v444, 7
  %v446 = vsub.s32 0, %v445
  %v447 = vrot.slane %v233, %v446
  %v448 = vmul.f32 %v428, %v447
  %v449 = vmul.f32 %v429, %v447
  %v450 = vmul.f32 %v430, %v447
  %v451 = vmul.f32 %v431, %v447
  %v452 = vmul.f32 %v432, %v447
  %v453 = vmul.f32 %v433, %v447
  %v454 = vmul.f32 %v434, %v447
  %v455 = vmul.f32 %v435, %v447
  %v456 = vmul.f32 %v436, %v447
  %v457 = vmul.f32 %v437, %v447
  %v458 = vmul.f32 %v438, %v447
  %v459 = vmul.f32 %v439, %v447
  %v460 = vmul.f32 %v440, %v447
  %v461 = vmul.f32 %v441, %v447
  %v462 = vmul.f32 %v442, %v447
  %v463 = vmul.f32 %v443, %v447
  %v464 = vlaneseq
  %v465 = vshrl.u32 %v464, 7
  %v466 = vsub.s32 0, %v465
  %v467 = vrot.slane %v234, %v466
  %v468 = vadd.f32 %v448, %v467
  %v469 = vadd.f32 %v449, %v467
  %v470 = vadd.f32 %v450, %v467
  %v471 = vadd.f32 %v451, %v467
  %v472 = vadd.f32 %v452, %v467
  %v473 = vadd.f32 %v453, %v467
  %v474 = vadd.f32 %v454, %v467
  %v475 = vadd.f32 %v455, %v467
  %v476 = vadd.f32 %v456, %v467
  %v477 = vadd.f32 %v457, %v467
  %v478 = vadd.f32 %v458, %v467
  %v479 = vadd.f32 %v459, %v467
  %v480 = vadd.f32 %v460, %v467
  %v481 = vadd.f32 %v461, %v467
  %v482 = vadd.f32 %v462, %v467
  %v483 = vadd.f32 %v463, %v467
  %484 = vst.msk [vmem:[%s3] sm:$0xff] %vm235, %v468
  %485 = vst.msk [vmem:[%s3 + $0x8] sm:$0xff] %vm235, %v469
  %486 = vst.msk [vmem:[%s3 + $0x10] sm:$0xff] %vm235, %v470
  %487 = vst.msk [vmem:[%s3 + $0x18] sm:$0xff] %vm235, %v471
  %488 = vst.msk [vmem:[%s3 + $0x20] sm:$0xff] %vm235, %v472
  %489 = vst.msk [vmem:[%s3 + $0x28] sm:$0xff] %vm235, %v473
  %490 = vst.msk [vmem:[%s3 + $0x30] sm:$0xff] %vm235, %v474
  %491 = vst.msk [vmem:[%s3 + $0x38] sm:$0xff] %vm235, %v475
  %492 = vst.msk [vmem:[%s3 + $0x40] sm:$0xff] %vm235, %v476
  %493 = vst.msk [vmem:[%s3 + $0x48] sm:$0xff] %vm235, %v477
  %494 = vst.msk [vmem:[%s3 + $0x50] sm:$0xff] %vm235, %v478
  %495 = vst.msk [vmem:[%s3 + $0x58] sm:$0xff] %vm235, %v479
  %496 = vst.msk [vmem:[%s3 + $0x60] sm:$0xff] %vm235, %v480
  %497 = vst.msk [vmem:[%s3 + $0x68] sm:$0xff] %vm235, %v481
  %498 = vst.msk [vmem:[%s3 + $0x70] sm:$0xff] %vm235, %v482
  %499 = vst.msk [vmem:[%s3 + $0x78] sm:$0xff] %vm235, %v483
  // Predicated region
  $region14: #{tpu_custom_call.1} parent=0 // pred_check
    _
  $region15: #{tpu_custom_call.1} parent=0 // pred_check_branch
    %501 = sbr.rel (0) target = $region17
  $region16: #{tpu_custom_call.1} parent=0 // pred_region
    _
  $region17: #{tpu_custom_call.1} parent=0 // pred_fallthru
    _
  // Predicated region
  $region18: #{tpu_custom_call.1} parent=0 // pred_check
    _
  $region19: #{tpu_custom_call.1} parent=0 // pred_check_branch
    %503 = sbr.rel (0) target = $region21
  $region20: #{tpu_custom_call.1} parent=0 // pred_region
    _
  $region21: #{tpu_custom_call.1} parent=0 // pred_fallthru
    _

</llo_original>
